<compile_context>
chip_gen: v7x
topology: tpu7x:2x2x1
jax: 0.10.0
libtpu: 0.0.40
codegen_flags: <defaults>
</compile_context>

<pallas_src>
import functools

import jax
import jax.numpy as jnp
from jax.experimental import pallas as pl
from jax.experimental.pallas import tpu as pltpu


def _round_up(a, b):
    return -(-a // b) * b


def _sublane(itemsize):
    # Rows packed per 32-bit sublane word: f32 -> 8, bf16 -> 16, int8 -> 32.
    return 8 * max(1, 4 // itemsize)


def _tpu_params():
    """Best-effort hardware query; conservative fallbacks if unavailable."""
    vmem_capacity = 64 << 20      # v7x per-TensorCore VMEM (smallest of the gens)
    multi_core = True             # even-step grid shaping is nearly free if wrong
    try:
        info = pltpu.get_tpu_info()
        vmem_capacity = int(getattr(info, "vmem_capacity_bytes", vmem_capacity))
    except Exception:
        pass
    try:
        kind = jax.devices()[0].device_kind.lower()
        # v5e / v6e are single-TensorCore chips: don't force grid splitting.
        if any(t in kind for t in ("v5 lite", "v5e", "v6 lite", "v6e")):
            multi_core = False
    except Exception:
        pass
    return vmem_capacity, multi_core


def _pad_block_kernel(x_ref, o_ref, *, lo, hi, value):
    """Assemble the fully padded tile in vregs and issue ONE lane-dense store.

    `lo` / `hi` are static per-axis pad amounts matching the block rank.
    NOTE: for integer dtypes a fractional `value` is truncated by jnp.full
    (differs from some torch F.pad error paths).
    """
    dt = o_ref.dtype
    out = x_ref[...]
    if out.dtype != dt:
        out = out.astype(dt)
    # Pad the minormost (lane) axis first so subsequent sublane-axis concats
    # operate on full-width, lane-dense pieces.
    for axis in range(out.ndim - 1, -1, -1):
        l, h = lo[axis], hi[axis]
        if l == 0 and h == 0:
            continue
        parts = []
        if l > 0:
            s = list(out.shape)
            s[axis] = l
            parts.append(jnp.full(s, value, dt))
        parts.append(out)
        if h > 0:
            s = list(out.shape)
            s[axis] = h
            parts.append(jnp.full(s, value, dt))
        out = jnp.concatenate(parts, axis=axis)
    o_ref[...] = out


def pad_pallas(x, pad, mode="zeros", value=0.0):
    """Semantics of nunif Pad.forward == F.pad(x, pad, mode, value) for NCHW.

    `pad` follows the PyTorch convention (last dim first):
      (left, right)              -> pads W only
      (left, right, top, bottom) -> pads W and H
    mode='zeros' is an alias for constant padding with value 0.0.
    """
    if mode == "zeros":
        value = 0.0
        mode = "constant"
    if mode != "constant":
        # TODO(synk): reflect / replicate / circular modes not implemented.
        raise NotImplementedError(f"mode={mode!r} not supported")

    assert x.ndim == 4, "this kernel assumes NCHW input"
    if len(pad) == 2:
        pad_l, pad_r = pad
        pad_t = pad_b = 0
    elif len(pad) == 4:
        pad_l, pad_r, pad_t, pad_b = pad
    else:
        raise NotImplementedError(
            "only length-2/4 pad tuples supported (no channel padding)")
    if min(pad_l, pad_r, pad_t, pad_b) < 0:
        raise NotImplementedError("negative padding (cropping) not supported")

    # No-op pad: skip the kernel (and its full HBM read+write pass) entirely.
    if pad_l == pad_r == pad_t == pad_b == 0:
        return x

    N, C, H, W = x.shape
    H_out = H + pad_t + pad_b
    W_out = W + pad_l + pad_r

    itemsize = jnp.dtype(x.dtype).itemsize
    sub = _sublane(itemsize)
    vmem_capacity, multi_core = _tpu_params()
    # Scoped-VMEM target: ~60% of per-core VMEM (headroom for internal
    # scratch), never below 32 MiB nor above 96 MiB.
    vmem_limit = min(max(32 << 20, (vmem_capacity * 3) // 5), 96 << 20)
    # Budget for ONE in+out block pair; the pipeline double-buffers both.
    pair_budget = (vmem_limit - (4 << 20)) // 2

    if pad_t == 0 and pad_b == 0:
        # ---- W-only fast path: collapse N*C*H into one large sublane axis.
        R = N * C * H
        x2 = x.reshape(R, W)
        row_bytes = (_round_up(W, 128) + _round_up(W_out, 128)) * itemsize
        rows_fit = max(sub, (pair_budget // max(row_bytes, 1)) // sub * sub)
        if rows_fit >= R:
            rb, steps = R, 1
        else:
            rb, steps = rows_fit, pl.cdiv(R, rows_fit)
        if multi_core and R > sub:
            # Even number of grid steps so v7x's two TensorCores split the
            # "parallel" axis evenly.
            if steps == 1:
                steps = 2
            elif steps % 2:
                steps += 1
            rb = min(max(sub, _round_up(pl.cdiv(R, steps), sub)), R)
            steps = pl.cdiv(R, rb)
        vmem_limit = max(vmem_limit,
                         min(2 * rb * row_bytes + (8 << 20), 112 << 20))

        kernel = functools.partial(
            _pad_block_kernel, lo=(0, pad_l), hi=(0, pad_r), value=value)
        out = pl.pallas_call(
            kernel,
            out_shape=jax.ShapeDtypeStruct((R, W_out), x.dtype),
            grid=(steps,),
            in_specs=[pl.BlockSpec((rb, W), lambda i: (i, 0))],
            out_specs=pl.BlockSpec((rb, W_out), lambda i: (i, 0)),
            compiler_params=pltpu.CompilerParams(
                dimension_semantics=("parallel",),
                vmem_limit_bytes=int(vmem_limit)),
        )(x2)
        return out.reshape(N, C, H, W_out)

    # ---- general H+W padding: (cb, H, W) -> (cb, H_out, W_out) blocks over
    # cdiv-chunks of the flattened N*C axis (partial tail block is fine since
    # each plane maps independently to its padded plane).
    P = N * C
    x3 = x.reshape(P, H, W)
    plane_in = _round_up(H, sub) * _round_up(W, 128) * itemsize
    plane_out = _round_up(H_out, sub) * _round_up(W_out, 128) * itemsize
    unit = plane_in + plane_out
    cb = max(1, min(P, pair_budget // unit))
    steps = pl.cdiv(P, cb)
    if multi_core and P > 1:
        if steps == 1:
            steps = 2
        elif steps % 2:
            steps += 1
        cb = pl.cdiv(P, steps)
        steps = pl.cdiv(P, cb)
    # TODO(synk): a single (H,W)->(H_out,W_out) plane pair that exceeds VMEM
    # is not tiled further (would need additional H/W tiling).
    vmem_limit = max(vmem_limit, min(2 * cb * unit + (8 << 20), 112 << 20))

    kernel = functools.partial(
        _pad_block_kernel, lo=(0, pad_t, pad_l), hi=(0, pad_b, pad_r),
        value=value)
    out = pl.pallas_call(
        kernel,
        out_shape=jax.ShapeDtypeStruct((P, H_out, W_out), x.dtype),
        grid=(steps,),
        in_specs=[pl.BlockSpec((cb, H, W), lambda i: (i, 0, 0))],
        out_specs=pl.BlockSpec((cb, H_out, W_out), lambda i: (i, 0, 0)),
        compiler_params=pltpu.CompilerParams(
            dimension_semantics=("parallel",),
            vmem_limit_bytes=int(vmem_limit)),
    )(x3)
    return out.reshape(N, C, H_out, W_out)


class Pad:
    """JAX/Pallas port of nunif.modules.pad.Pad (constant / zeros modes)."""

    def __init__(self, pad, mode="zeros", value=0.0):
        if mode == "zeros":
            value = 0.0
            mode = "constant"
        self.mode = mode
        self.value = value
        self.pad = pad

    def __call__(self, x):
        return pad_pallas(x, self.pad, mode=self.mode, value=self.value)


if __name__ == "__main__":
    key = jax.random.PRNGKey(0)
    x = jax.random.normal(key, (2, 4, 16, 16), dtype=jnp.float32)

    # Case 1: pad=(1, 1) -> only W padded, zeros mode (W-only fast path).
    m1 = Pad(pad=(1, 1), mode="zeros")
    y1 = jax.block_until_ready(m1(x))
    ref1 = jnp.pad(x, ((0, 0), (0, 0), (0, 0), (1, 1)))
    assert y1.shape == (2, 4, 16, 18), y1.shape
    assert jnp.allclose(y1, ref1), "mismatch vs reference (zeros, W-only)"

    # Case 2: pad=(1, 2, 3, 4), constant value 0.5 -> W and H padded.
    m2 = Pad(pad=(1, 2, 3, 4), mode="constant", value=0.5)
    y2 = jax.block_until_ready(m2(x))
    ref2 = jnp.pad(x, ((0, 0), (0, 0), (3, 4), (1, 2)), constant_values=0.5)
    assert y2.shape == (2, 4, 23, 19), y2.shape
    assert jnp.allclose(y2, ref2), "mismatch vs reference (constant=0.5)"

    # Case 3: zero padding amounts degenerate to a pure copy (early return).
    m3 = Pad(pad=(0, 0, 0, 0), mode="zeros")
    y3 = jax.block_until_ready(m3(x))
    assert y3.shape == x.shape and jnp.allclose(y3, x), "mismatch (no-op pad)"

    print("KERNEL_OK")
</pallas_src>

<mosaic_0001>
module attributes {stable_mosaic.version = 11 : i64} {
  func.func @_pad_block_kernel(%arg0: i32, %arg1: memref<64x16xf32, #tpu.memory_space<vmem>>, %arg2: memref<64x18xf32, #tpu.memory_space<vmem>>) attributes {dimension_semantics = [#tpu.dimension_semantics<parallel>], iteration_bounds = array<i64: 2>, scalar_prefetch = 0 : i64, scratch_operands = 0 : i64, tpu.core_type = #tpu.core_type<tc>, window_params = [{transform_indices = @transform_0, window_bounds = array<i64: 64, 16>}, {transform_indices = @transform_1, window_bounds = array<i64: 64, 18>}]} {
    %c0 = arith.constant 0 : index
    %c0_0 = arith.constant 0 : index
    %0 = vector.load %arg1[%c0, %c0_0] : memref<64x16xf32, #tpu.memory_space<vmem>>, vector<64x16xf32>
    %cst = arith.constant 0.000000e+00 : f32
    %1 = vector.broadcast %cst : f32 to vector<64x1xf32>
    %cst_1 = arith.constant 0.000000e+00 : f32
    %2 = vector.broadcast %cst_1 : f32 to vector<64x1xf32>
    %3 = tpu.concatenate %1, %0, %2 in 1 : vector<64x1xf32>, vector<64x16xf32>, vector<64x1xf32> -> vector<64x18xf32>
    %c0_2 = arith.constant 0 : index
    %c0_3 = arith.constant 0 : index
    %4 = vector.load %arg2[%c0_2, %c0_3] : memref<64x18xf32, #tpu.memory_space<vmem>>, vector<64x18xf32>
    tpu.vector_store %arg2[%c0_2, %c0_3], %3 {strides = array<i32>} : memref<64x18xf32, #tpu.memory_space<vmem>>, vector<64x18xf32>,
    return
  }
  func.func @transform_0(%arg0: i32) -> (i32, i32) {
    %c0_i32 = arith.constant 0 : i32
    %c0_i32_0 = arith.constant 0 : i32
    return %arg0, %c0_i32 : i32, i32
  }
  func.func @transform_1(%arg0: i32) -> (i32, i32) {
    %c0_i32 = arith.constant 0 : i32
    %c0_i32_0 = arith.constant 0 : i32
    return %arg0, %c0_i32 : i32, i32
  }
}

</mosaic_0001>

<llo_original>
// kernel: tpu_custom_call.1
$region0: #{tpu_custom_call.1}
  #allocation0 [shape = 'u32[]', space=smem, size = 0x4, offset = 0x4, fixed_abs, tag = 'smem constant byte address 0x4 - core index']
  #allocation1 [shape = 'u32[144,128]{1,0:T(1,128)}', space=vmem, size = 0x12000, scoped, tag = 'internal scratch']
  %s0 = inlined_call_operand.vmem [shape: f32[128,16], index: 0, kind: input, shape index: {}]
  %s1 = inlined_call_operand.vmem [shape: f32[128,18], index: 1, kind: output, shape index: {}]
  %s2 = sld [smem:[#allocation0]]
  $region37: #{tpu_custom_call.1} parent=0
    _
  %s4 = ssub.s32 1, %s2
  %s5 = scalar_select 0, %s4, %s2
  loop: start=0, step=1, limit=4
  $region2: #{tpu_custom_call.1} parent=0 // loop_pre_header
    _
  $region3: #{tpu_custom_call.1} parent=0 // loop_header
    %s7 = sphi 0, %s11
    %p8 = scmp.ge.s32.totalorder %s7, 4
    %s17 = sphi 0, %s19
    %s20 = sphi 0, %s17
    %s21 = sphi 0, %s20
    %s37 = sphi 0, %s21
    %s43 = sphi 0, %s45
    %s46 = sphi 0, %s43
    %s47 = sphi 0, %s46
    %s63 = sphi 0, %s47
  $region4: #{tpu_custom_call.1} parent=0 // loop_header_branch
    %10 = sbr.rel (%p8) target = $region8
  $region5: #{tpu_custom_call.1} parent=0 // loop_body
    %s12 = ssub.s32 %s7, 1
    %s13 = ssub.s32 %s7, 2
    %s14 = sadd.s32 %s7, 1
    %s15 = ssub.s32 %s7, %s14
    %p16 = scmp.eq.s32.totalorder %s15, 0
    %s18 = sadd.s32 %s17, 1
    %s19 = scalar_select %p16, %s17, %s18
    %p22 = pneg %p16
    %p23 = scmp.eq.s32.totalorder %s7, 1
    %p24 = por %p22, %p23
    %p25 = scmp.ne.s32.totalorder %s17, %s20
    %p26 = scmp.eq.s32.totalorder %s7, 0
    %p27 = por %p25, %p26
    %p28 = scmp.ne.s32.totalorder %s17, %s20
    %p29 = scmp.eq.s32.totalorder %s12, 1
    %p30 = por %p28, %p29
    %p31 = scmp.ne.s32.totalorder %s20, %s21
    %p32 = scmp.eq.s32.totalorder %s12, 0
    %p33 = por %p31, %p32
    %p34 = scmp.ne.s32.totalorder %s20, %s21
    %p35 = scmp.eq.s32.totalorder %s13, 1
    %p36 = por %p34, %p35
    %p38 = scmp.ne.s32.totalorder %s21, %s37
    %p39 = scmp.eq.s32.totalorder %s13, 0
    %p40 = por %p38, %p39
    %s41 = ssub.s32 %s7, %s14
    %p42 = scmp.eq.s32.totalorder %s41, 0
    %s44 = sadd.s32 %s43, 1
    %s45 = scalar_select %p42, %s43, %s44
    %p48 = pneg %p42
    %p49 = scmp.eq.s32.totalorder %s7, 1
    %p50 = por %p48, %p49
    %p51 = scmp.ne.s32.totalorder %s43, %s46
    %p52 = scmp.eq.s32.totalorder %s7, 0
    %p53 = por %p51, %p52
    %p54 = scmp.ne.s32.totalorder %s43, %s46
    %p55 = scmp.eq.s32.totalorder %s12, 1
    %p56 = por %p54, %p55
    %p57 = scmp.ne.s32.totalorder %s46, %s47
    %p58 = scmp.eq.s32.totalorder %s12, 0
    %p59 = por %p57, %p58
    %p60 = scmp.ne.s32.totalorder %s46, %s47
    %p61 = scmp.eq.s32.totalorder %s13, 1
    %p62 = por %p60, %p61
    %p64 = scmp.ne.s32.totalorder %s47, %s63
    %p65 = scmp.eq.s32.totalorder %s13, 0
    %p66 = por %p64, %p65
    %p67 = scmp.le.s32.totalorder 1, %s7
    %p68 = scmp.lt.s32.totalorder %s7, 3
    %p69 = pnand %p67, %p68
    %p70 = pneg %p69
    // Predicated region
    $region9: #{tpu_custom_call.1} parent=5 // pred_check
      _
    $region10: #{tpu_custom_call.1} parent=5 // pred_check_branch
      %72 = sbr.rel (%p69) target = $region12
    $region11: #{tpu_custom_call.1} parent=5 // pred_region
      %s73 = ssub.s32 %s7, 1
    $region12: #{tpu_custom_call.1} parent=5 // pred_fallthru
      _
    %p74 = scmp.lt.s32.totalorder %s7, 2
    // Predicated region
    $region13: #{tpu_custom_call.1} parent=5 // pred_check
      %p75 = pneg %p74
    $region14: #{tpu_custom_call.1} parent=5 // pred_check_branch
      %77 = sbr.rel (%p75) target = $region16
    $region15: #{tpu_custom_call.1} parent=5 // pred_region
      // Predicated region
      $region17: #{tpu_custom_call.1} parent=15 // pred_check
        %p78 = pneg %p27
      $region18: #{tpu_custom_call.1} parent=15 // pred_check_branch
        %80 = sbr.rel (%p78) target = $region20
      $region19: #{tpu_custom_call.1} parent=15 // pred_region
        %s81 = smul.u32 8, %s7
        %p82 = scmp.lt.s32.totalorder %s81, 15
        %s83 = scalar_select %p82, %s81, 15
        %s84 = smul.addr %s83, 8
        %s85 = scalar_lea.vmem %s0, %s84
        %s86 = smul.u32 8, %s7
      $region20: #{tpu_custom_call.1} parent=15 // pred_fallthru
        _
    $region16: #{tpu_custom_call.1} parent=5 // pred_fallthru
      _
    %p87 = scmp.le.s32.totalorder 1, %s7
    %p88 = scmp.lt.s32.totalorder %s7, 3
    %p89 = pnand %p87, %p88
    %p90 = pneg %p89
    // Predicated region
    $region21: #{tpu_custom_call.1} parent=5 // pred_check
      _
    $region22: #{tpu_custom_call.1} parent=5 // pred_check_branch
      %92 = sbr.rel (%p89) target = $region24
    $region23: #{tpu_custom_call.1} parent=5 // pred_region
      %s93 = ssub.s32 %s7, 1
      %s94 = smul.u32 8, %s12
      %p95 = scmp.lt.s32.totalorder %s94, 15
      %s96 = scalar_select %p95, %s94, 15
      %s97 = smul.addr %s96, 8
      %s98 = scalar_lea.vmem %s0, %s97
      %p99 = pneg %p33
      %p100 = pneg %p30
      %p101 = pneg %p59
      %p102 = pneg %p56
      %s103 = smul.u32 8, %s12
      %p104 = scmp.lt.s32.totalorder %s103, 15
      %s105 = scalar_select %p104, %s103, 15
      %s106 = smul.addr %s105, 8
      %s107 = scalar_lea.vmem %s1, %s106
      %s108 = smul.u32 8, %s12
      %p109 = scmp.lt.s32.totalorder %s108, 15
      %s110 = scalar_select %p109, %s108, 15
      %s111 = smul.addr %s110, 8
      %s112 = scalar_lea.vmem %s0, %s111
      %s113 = smul.u32 8, %s12
      %s114 = smul.u32 8, %s12
      %p115 = scmp.lt.s32.totalorder %s114, 15
      %s116 = scalar_select %p115, %s114, 15
      %s117 = smul.addr %s116, 8
      %s118 = scalar_lea.vmem %s1, %s117
      %s119 = smul.u32 8, %s12
      %v120 = vld [vmem:[%s112] sm:$0xff]
      %v121 = vld [vmem:[%s112 + $0x8] sm:$0xff]
      %v122 = vld [vmem:[%s112 + $0x10] sm:$0xff]
      %v123 = vld [vmem:[%s112 + $0x18] sm:$0xff]
      %v124 = vld [vmem:[%s112 + $0x20] sm:$0xff]
      %v125 = vld [vmem:[%s112 + $0x28] sm:$0xff]
      %v126 = vld [vmem:[%s112 + $0x30] sm:$0xff]
      %v127 = vld [vmem:[%s112 + $0x38] sm:$0xff]
      %136 = vrot.lane.b32.xlu0 %v120, 1
      %v137 = vpop.permute.xlu0 %136
      %138 = vrot.lane.b32.xlu0 %v121, 1
      %v139 = vpop.permute.xlu0 %138
      %140 = vrot.lane.b32.xlu0 %v122, 1
      %v141 = vpop.permute.xlu0 %140
      %142 = vrot.lane.b32.xlu0 %v123, 1
      %v143 = vpop.permute.xlu0 %142
      %144 = vrot.lane.b32.xlu0 %v124, 1
      %v145 = vpop.permute.xlu0 %144
      %146 = vrot.lane.b32.xlu0 %v125, 1
      %v147 = vpop.permute.xlu0 %146
      %148 = vrot.lane.b32.xlu0 %v126, 1
      %v149 = vpop.permute.xlu0 %148
      %150 = vrot.lane.b32.xlu0 %v127, 1
      %v151 = vpop.permute.xlu0 %150
      %vm160 = vcmask 7168
      %v161 = vsel %vm160, 0.0, %v137
      %v162 = vsel %vm160, 0.0, %v139
      %v163 = vsel %vm160, 0.0, %v141
      %v164 = vsel %vm160, 0.0, %v143
      %v165 = vsel %vm160, 0.0, %v145
      %v166 = vsel %vm160, 0.0, %v147
      %v167 = vsel %vm160, 0.0, %v149
      %v168 = vsel %vm160, 0.0, %v151
      %vm169 = vcmask 138240
      %v170 = vsel %vm169, %v161, 0.0
      %v171 = vsel %vm169, %v162, 0.0
      %v172 = vsel %vm169, %v163, 0.0
      %v173 = vsel %vm169, %v164, 0.0
      %v174 = vsel %vm169, %v165, 0.0
      %v175 = vsel %vm169, %v166, 0.0
      %v176 = vsel %vm169, %v167, 0.0
      %v177 = vsel %vm169, %v168, 0.0
      %vm178 = vcmask 146432
      %179 = vst.msk [vmem:[%s118] sm:$0xff] %vm178, %v170
      %180 = vst.msk [vmem:[%s118 + $0x8] sm:$0xff] %vm178, %v171
      %181 = vst.msk [vmem:[%s118 + $0x10] sm:$0xff] %vm178, %v172
      %182 = vst.msk [vmem:[%s118 + $0x18] sm:$0xff] %vm178, %v173
      %183 = vst.msk [vmem:[%s118 + $0x20] sm:$0xff] %vm178, %v174
      %184 = vst.msk [vmem:[%s118 + $0x28] sm:$0xff] %vm178, %v175
      %185 = vst.msk [vmem:[%s118 + $0x30] sm:$0xff] %vm178, %v176
      %186 = vst.msk [vmem:[%s118 + $0x38] sm:$0xff] %vm178, %v177
      %s187 = smul.u32 8, %s12
      %p188 = scmp.lt.s32.totalorder %s187, 15
      %s189 = scalar_select %p188, %s187, 15
      %s190 = smul.addr %s189, 8
      %s191 = scalar_lea.vmem %s1, %s190
      // Predicated region
      $region25: #{tpu_custom_call.1} parent=23 // pred_check
        %p192 = pneg %p56
      $region26: #{tpu_custom_call.1} parent=23 // pred_check_branch
        %194 = sbr.rel (%p192) target = $region28
      $region27: #{tpu_custom_call.1} parent=23 // pred_region
        %s195 = smul.u32 8, %s12
      $region28: #{tpu_custom_call.1} parent=23 // pred_fallthru
        _
    $region24: #{tpu_custom_call.1} parent=5 // pred_fallthru
      _
    %p196 = scmp.le.s32.totalorder 2, %s7
    // Predicated region
    $region29: #{tpu_custom_call.1} parent=5 // pred_check
      %p197 = pneg %p196
    $region30: #{tpu_custom_call.1} parent=5 // pred_check_branch
      %199 = sbr.rel (%p197) target = $region32
    $region31: #{tpu_custom_call.1} parent=5 // pred_region
      %s200 = ssub.s32 %s7, 2
      // Predicated region
      $region33: #{tpu_custom_call.1} parent=31 // pred_check
        %p201 = pneg %p62
      $region34: #{tpu_custom_call.1} parent=31 // pred_check_branch
        %203 = sbr.rel (%p201) target = $region36
      $region35: #{tpu_custom_call.1} parent=31 // pred_region
        %s204 = smul.u32 8, %s13
        %p205 = scmp.lt.s32.totalorder %s204, 15
        %s206 = scalar_select %p205, %s204, 15
        %s207 = smul.addr %s206, 8
        %s208 = scalar_lea.vmem %s1, %s207
      $region36: #{tpu_custom_call.1} parent=31 // pred_fallthru
        _
    $region32: #{tpu_custom_call.1} parent=5 // pred_fallthru
      _
  $region6: #{tpu_custom_call.1} parent=0 // loop_footer
    %s11 = sadd.s32 1, %s7
  $region7: #{tpu_custom_call.1} parent=0 // loop_footer_branch
    %6 = sbr.rel target = $region3
  $region8: #{tpu_custom_call.1} parent=0 // loop_exit
    _

</llo_original>
